<compile_context>
chip_gen: v5e
topology: v5e:2x2
jax: 0.10.0
libtpu: 0.0.40
codegen_flags: <defaults>
</compile_context>

<pallas_src>
import functools

import jax
import jax.numpy as jnp
from jax import lax
from jax.experimental import pallas as pl
from jax.experimental.pallas import tpu as pltpu

_SQRT_2_OVER_PI = 0.7978845608028654
_INV_SQRT_2 = 0.7071067811865476


def _gelu(x, *, approximate):
    if approximate:
        # tanh-approx GELU: the transcendental runs on the EUP slot and overlaps
        # the MXU / VPU work; only a handful of VPU ops remain.
        inner = _SQRT_2_OVER_PI * (x + 0.044715 * (x * x * x))
        return 0.5 * x * (1.0 + jnp.tanh(inner))
    # Exact erf formulation (bit-matches torch / transformers ACT2FN['gelu']).
    return 0.5 * x * (1.0 + lax.erf(x * _INV_SQRT_2))


def _ffn_kernel(x_ref, w1_ref, b1_ref, w2_ref, b2_ref, gamma_ref, beta_ref,
                o_ref, *, eps, approximate_gelu):
    mxu_dtype = w1_ref.dtype  # bf16 by default; keep both matmul operands in it

    # w_1: 1x1 conv == per-token linear d_in -> d_hid (MXU, f32 accumulation).
    h = jnp.dot(x_ref[...].astype(mxu_dtype), w1_ref[...],
                preferred_element_type=jnp.float32)
    h = h + b1_ref[...].astype(jnp.float32)
    h = _gelu(h, approximate=approximate_gelu)

    # w_2: 1x1 conv == per-token linear d_hid -> d_in (MXU, f32 accumulation).
    y = jnp.dot(h.astype(w2_ref.dtype), w2_ref[...],
                preferred_element_type=jnp.float32)
    y = y + b2_ref[...].astype(jnp.float32)

    # dropout (eval) -> identity; residual add in f32.  Re-read x from VMEM to
    # keep its live range out of the matmul/GELU region (cheap vld, no DMA).
    y = y + x_ref[...].astype(jnp.float32)

    # LayerNorm over d_in: center once, reuse centered values for the variance.
    mean = jnp.mean(y, axis=-1, keepdims=True)
    centered = y - mean
    var = jnp.mean(centered * centered, axis=-1, keepdims=True)
    out = centered * lax.rsqrt(var + eps)
    out = out * gamma_ref[...].astype(jnp.float32) \
          + beta_ref[...].astype(jnp.float32)

    o_ref[...] = out.astype(o_ref.dtype)


def _round_up(n, m):
    return ((n + m - 1) // m) * m


def positionwise_feed_forward(x, w1, b1, w2, b2, gamma, beta,
                              *, eps=1e-5, tm=512,
                              compute_dtype=jnp.bfloat16,
                              approximate_gelu=True,
                              min_grid_steps=2,
                              single_buffer_invariants=True,
                              vmem_limit_bytes=None):
    """x: (B, L, d_in).  w1: (d_in, d_hid), w2: (d_hid, d_in).

    w1/w2 are the Conv1d kernels with the size-1 spatial dim squeezed and
    transposed so the per-token op is `row @ W`.  For production shapes keep
    d_in / d_hid multiples of 128 (lane-dense stores, full MXU passes; matters
    most on v5e).
    """
    B, L, d_in = x.shape
    d_hid = w1.shape[1]
    n_rows = B * L

    # Row tile: multiple of 8 sublanes; capped so the "parallel" grid keeps at
    # least `min_grid_steps` steps (v7x has 2 TensorCores sharing that axis).
    tm = max(8, (tm // 8) * 8)
    if n_rows < 8:
        tm_eff = n_rows  # block == full dim, satisfies the (8,128) rule
    else:
        tm_eff = min(tm, _round_up(pl.cdiv(n_rows, max(1, min_grid_steps)), 8))
    grid = (pl.cdiv(n_rows, tm_eff),)

    # Weights cast once in the wrapper so the MXU runs in bf16 mode; biases and
    # LN params staged as 2-D (1, C) f32 rows.
    w1c = w1.astype(compute_dtype)
    w2c = w2.astype(compute_dtype)
    b1_2 = b1.reshape(1, d_hid).astype(jnp.float32)
    b2_2 = b2.reshape(1, d_in).astype(jnp.float32)
    g_2 = gamma.reshape(1, d_in).astype(jnp.float32)
    be_2 = beta.reshape(1, d_in).astype(jnp.float32)

    x2 = x.reshape(n_rows, d_in)  # no padding: Pallas masks the boundary block

    x_bytes = jnp.dtype(x.dtype).itemsize
    c_bytes = jnp.dtype(compute_dtype).itemsize

    if vmem_limit_bytes is None:
        # Footprint-derived budget with headroom, clamped to physical VMEM
        # (64 MiB/core on v7x, 128 MiB on v5e/v6e) minus compiler slack.
        inv_bufs = 1 if single_buffer_invariants else 2
        weight_bytes = inv_bufs * 2 * d_in * d_hid * c_bytes
        param_bytes = inv_bufs * (d_hid + 3 * d_in) * 4
        io_bytes = 2 * 2 * tm_eff * d_in * x_bytes          # x + out, double-buffered
        live_bytes = tm_eff * d_hid * 4 + 2 * tm_eff * d_in * 4  # h + f32 temps
        needed = weight_bytes + param_bytes + io_bytes + live_bytes
        try:
            phys = pltpu.get_tpu_info().vmem_capacity_bytes
        except Exception:  # query only affects a numeric default, never layout
            phys = 64 * 2 ** 20  # conservative (v7x) assumption
        cap = max(32 * 2 ** 20, phys - (16 << 20))
        vmem_limit_bytes = min(cap, max(32 * 2 ** 20, int(needed * 1.5) + (4 << 20)))

    cost = pl.CostEstimate(
        flops=4 * n_rows * d_in * d_hid,
        transcendentals=n_rows * d_hid,
        bytes_accessed=2 * n_rows * d_in * x_bytes + 2 * d_in * d_hid * c_bytes,
    )

    kernel = functools.partial(_ffn_kernel, eps=eps,
                               approximate_gelu=approximate_gelu)

    def _run(use_single_buffer):
        # Grid-invariant operands (weights, biases, LN params) only need one
        # VMEM copy: their index_map is constant across the grid.
        inv = (dict(pipeline_mode=pl.Buffered(1)) if use_single_buffer else {})
        return pl.pallas_call(
            kernel,
            out_shape=jax.ShapeDtypeStruct((n_rows, d_in), x.dtype),
            grid_spec=pltpu.PrefetchScalarGridSpec(
                num_scalar_prefetch=0,
                grid=grid,
                in_specs=[
                    pl.BlockSpec((tm_eff, d_in), lambda i: (i, 0)),        # x
                    pl.BlockSpec((d_in, d_hid), lambda i: (0, 0), **inv),  # w1
                    pl.BlockSpec((1, d_hid), lambda i: (0, 0), **inv),     # b1
                    pl.BlockSpec((d_hid, d_in), lambda i: (0, 0), **inv),  # w2
                    pl.BlockSpec((1, d_in), lambda i: (0, 0), **inv),      # b2
                    pl.BlockSpec((1, d_in), lambda i: (0, 0), **inv),      # gamma
                    pl.BlockSpec((1, d_in), lambda i: (0, 0), **inv),      # beta
                ],
                out_specs=pl.BlockSpec((tm_eff, d_in), lambda i: (i, 0)),
            ),
            compiler_params=pltpu.CompilerParams(
                dimension_semantics=("parallel",),
                vmem_limit_bytes=vmem_limit_bytes),
            cost_estimate=cost,
        )(x2, w1c, b1_2, w2c, b2_2, g_2, be_2)

    if single_buffer_invariants:
        try:
            out2 = _run(True)
        except (TypeError, ValueError, NotImplementedError,
                pltpu.LoweringException):
            # Narrow fallback: only when pipeline_mode=pl.Buffered(1) is rejected
            # by this JAX/Mosaic version.  Default double-buffering is still
            # correct (it just doubles resident-weight VMEM).
            out2 = _run(False)
    else:
        out2 = _run(False)

    return out2.reshape(B, L, d_in)


def _reference(x, w1, b1, w2, b2, gamma, beta, eps=1e-5, approximate_gelu=True):
    # Plain-JAX reference mirroring the PyTorch forward (eval mode).
    h = _gelu(jnp.einsum('bld,dh->blh', x, w1) + b1, approximate=approximate_gelu)
    y = jnp.einsum('blh,hd->bld', h, w2) + b2
    y = y + x
    mean = jnp.mean(y, axis=-1, keepdims=True)
    var = jnp.mean((y - mean) ** 2, axis=-1, keepdims=True)
    return (y - mean) / jnp.sqrt(var + eps) * gamma + beta


if __name__ == "__main__":
    # NOTE: demo sizes are intentionally tiny; real model sizes should keep
    # d_in / d_hid multiples of 128 for lane-dense stores and full MXU passes.
    B, L, d_in, d_hid = 2, 8, 32, 64

    key = jax.random.PRNGKey(0)
    kx, k1, k2, k3, k4, kx2 = jax.random.split(key, 6)

    x = jax.random.normal(kx, (B, L, d_in), dtype=jnp.float32)

    # Conv1d(d_in, d_hid, 1).weight has shape (d_hid, d_in, 1); as a matmul on
    # (tokens, d_in) rows it is W1 = weight[:, :, 0].T -> (d_in, d_hid).
    w1 = jax.random.normal(k1, (d_in, d_hid), jnp.float32) * (1.0 / jnp.sqrt(d_in))
    b1 = jax.random.normal(k2, (d_hid,), jnp.float32) * 0.02
    w2 = jax.random.normal(k3, (d_hid, d_in), jnp.float32) * (1.0 / jnp.sqrt(d_hid))
    b2 = jax.random.normal(k4, (d_in,), jnp.float32) * 0.02
    gamma = jnp.ones((d_in,), dtype=jnp.float32)
    beta = jnp.zeros((d_in,), dtype=jnp.float32)

    # 1) Default fast path: bf16 MXU + tanh-approx GELU (relaxed tolerance).
    out = positionwise_feed_forward(x, w1, b1, w2, b2, gamma, beta)
    out = jax.block_until_ready(out)
    ref = _reference(x, w1, b1, w2, b2, gamma, beta, approximate_gelu=True)
    assert out.shape == (B, L, d_in)
    assert jnp.allclose(out, ref, atol=5e-2, rtol=5e-2), "mismatch (bf16 path)"

    # 2) Exact path: f32 compute + exact-erf GELU (tight tolerance).
    out_exact = positionwise_feed_forward(
        x, w1, b1, w2, b2, gamma, beta,
        compute_dtype=jnp.float32, approximate_gelu=False)
    out_exact = jax.block_until_ready(out_exact)
    ref_exact = _reference(x, w1, b1, w2, b2, gamma, beta, approximate_gelu=False)
    assert jnp.allclose(out_exact, ref_exact, atol=1e-4, rtol=1e-4), \
        "mismatch (f32 exact path)"

    # 3) Ragged rows (B*L not a multiple of the tile) -> exercises the masked
    #    partial boundary block (no wrapper padding anymore).
    B2, L2 = 2, 5
    x_b = jax.random.normal(kx2, (B2, L2, d_in), dtype=jnp.float32)
    out_b = positionwise_feed_forward(x_b, w1, b1, w2, b2, gamma, beta)
    out_b = jax.block_until_ready(out_b)
    ref_b = _reference(x_b, w1, b1, w2, b2, gamma, beta, approximate_gelu=True)
    assert out_b.shape == (B2, L2, d_in)
    assert jnp.allclose(out_b, ref_b, atol=5e-2, rtol=5e-2), "mismatch (ragged case)"

    print("KERNEL_OK")
</pallas_src>

<mosaic_0001>
module attributes {stable_mosaic.version = 11 : i64} {
  func.func @_ffn_kernel(%arg0: i32, %arg1: memref<8x32xf32, #tpu.memory_space<vmem>>, %arg2: memref<32x64xbf16, #tpu.memory_space<vmem>>, %arg3: memref<1x64xf32, #tpu.memory_space<vmem>>, %arg4: memref<64x32xbf16, #tpu.memory_space<vmem>>, %arg5: memref<1x32xf32, #tpu.memory_space<vmem>>, %arg6: memref<1x32xf32, #tpu.memory_space<vmem>>, %arg7: memref<1x32xf32, #tpu.memory_space<vmem>>, %arg8: memref<8x32xf32, #tpu.memory_space<vmem>>) attributes {dimension_semantics = [#tpu.dimension_semantics<parallel>], iteration_bounds = array<i64: 2>, scalar_prefetch = 0 : i64, scratch_operands = 0 : i64, tpu.core_type = #tpu.core_type<tc>, window_params = [{transform_indices = @transform_0, window_bounds = array<i64: 8, 32>}, {pipeline_mode = #tpu.pipeline_mode<synchronous>, transform_indices = @transform_1, window_bounds = array<i64: 32, 64>}, {pipeline_mode = #tpu.pipeline_mode<synchronous>, transform_indices = @transform_2, window_bounds = array<i64: 1, 64>}, {pipeline_mode = #tpu.pipeline_mode<synchronous>, transform_indices = @transform_3, window_bounds = array<i64: 64, 32>}, {pipeline_mode = #tpu.pipeline_mode<synchronous>, transform_indices = @transform_4, window_bounds = array<i64: 1, 32>}, {pipeline_mode = #tpu.pipeline_mode<synchronous>, transform_indices = @transform_5, window_bounds = array<i64: 1, 32>}, {pipeline_mode = #tpu.pipeline_mode<synchronous>, transform_indices = @transform_6, window_bounds = array<i64: 1, 32>}, {transform_indices = @transform_7, window_bounds = array<i64: 8, 32>}]} {
    %c0 = arith.constant 0 : index
    %c0_0 = arith.constant 0 : index
    %0 = vector.load %arg1[%c0, %c0_0] : memref<8x32xf32, #tpu.memory_space<vmem>>, vector<8x32xf32>
    %1 = arith.truncf %0 : vector<8x32xf32> to vector<8x32xbf16>
    %c0_1 = arith.constant 0 : index
    %c0_2 = arith.constant 0 : index
    %2 = vector.load %arg2[%c0_1, %c0_2] : memref<32x64xbf16, #tpu.memory_space<vmem>>, vector<32x64xbf16>
    %cst = arith.constant dense<0.000000e+00> : vector<8x64xf32>
    %3 = tpu.matmul %1, %2, %cst {dimension_numbers = #tpu.dot_dimension_numbers<[1], [0], [0], [1], [0, 0, 1, 1], [], []>} : vector<8x32xbf16>, vector<32x64xbf16>, vector<8x64xf32> -> vector<8x64xf32>
    %c0_3 = arith.constant 0 : index
    %c0_4 = arith.constant 0 : index
    %4 = vector.load %arg3[%c0_3, %c0_4] : memref<1x64xf32, #tpu.memory_space<vmem>>, vector<1x64xf32>
    %5 = vector.broadcast %4 : vector<1x64xf32> to vector<8x64xf32>
    %6 = arith.addf %3, %5 : vector<8x64xf32>
    %7 = arith.mulf %6, %6 : vector<8x64xf32>
    %8 = arith.mulf %7, %6 : vector<8x64xf32>
    %cst_5 = arith.constant 4.471500e-02 : f32
    %9 = vector.broadcast %cst_5 : f32 to vector<8x64xf32>
    %10 = arith.mulf %9, %8 : vector<8x64xf32>
    %11 = arith.addf %6, %10 : vector<8x64xf32>
    %cst_6 = arith.constant 0.797884583 : f32
    %12 = vector.broadcast %cst_6 : f32 to vector<8x64xf32>
    %13 = arith.mulf %12, %11 : vector<8x64xf32>
    %cst_7 = arith.constant 5.000000e-01 : f32
    %14 = vector.broadcast %cst_7 : f32 to vector<8x64xf32>
    %15 = arith.mulf %14, %6 : vector<8x64xf32>
    %16 = math.tanh %13 : vector<8x64xf32>
    %cst_8 = arith.constant 1.000000e+00 : f32
    %17 = vector.broadcast %cst_8 : f32 to vector<8x64xf32>
    %18 = arith.addf %17, %16 : vector<8x64xf32>
    %19 = arith.mulf %15, %18 : vector<8x64xf32>
    %20 = arith.truncf %19 : vector<8x64xf32> to vector<8x64xbf16>
    %c0_9 = arith.constant 0 : index
    %c0_10 = arith.constant 0 : index
    %21 = vector.load %arg4[%c0_9, %c0_10] : memref<64x32xbf16, #tpu.memory_space<vmem>>, vector<64x32xbf16>
    %cst_11 = arith.constant dense<0.000000e+00> : vector<8x32xf32>
    %22 = tpu.matmul %20, %21, %cst_11 {dimension_numbers = #tpu.dot_dimension_numbers<[1], [0], [0], [1], [0, 0, 1, 1], [], []>} : vector<8x64xbf16>, vector<64x32xbf16>, vector<8x32xf32> -> vector<8x32xf32>
    %c0_12 = arith.constant 0 : index
    %c0_13 = arith.constant 0 : index
    %23 = vector.load %arg5[%c0_12, %c0_13] : memref<1x32xf32, #tpu.memory_space<vmem>>, vector<1x32xf32>
    %24 = vector.broadcast %23 : vector<1x32xf32> to vector<8x32xf32>
    %25 = arith.addf %22, %24 : vector<8x32xf32>
    %c0_14 = arith.constant 0 : index
    %c0_15 = arith.constant 0 : index
    %26 = vector.load %arg1[%c0_14, %c0_15] : memref<8x32xf32, #tpu.memory_space<vmem>>, vector<8x32xf32>
    %27 = arith.addf %25, %26 : vector<8x32xf32>
    %cst_16 = arith.constant dense<0.000000e+00> : vector<8xf32>
    %28 = vector.multi_reduction <add>, %27, %cst_16 [1] : vector<8x32xf32> to vector<8xf32>
    %29 = vector.shape_cast %28 : vector<8xf32> to vector<8x1xf32>
    %cst_17 = arith.constant 3.200000e+01 : f32
    %30 = vector.broadcast %cst_17 : f32 to vector<8x1xf32>
    %31 = arith.divf %29, %30 : vector<8x1xf32>
    %32 = vector.broadcast %31 : vector<8x1xf32> to vector<8x32xf32>
    %33 = arith.subf %27, %32 : vector<8x32xf32>
    %34 = arith.mulf %33, %33 : vector<8x32xf32>
    %cst_18 = arith.constant dense<0.000000e+00> : vector<8xf32>
    %35 = vector.multi_reduction <add>, %34, %cst_18 [1] : vector<8x32xf32> to vector<8xf32>
    %36 = vector.shape_cast %35 : vector<8xf32> to vector<8x1xf32>
    %cst_19 = arith.constant 3.200000e+01 : f32
    %37 = vector.broadcast %cst_19 : f32 to vector<8x1xf32>
    %38 = arith.divf %36, %37 : vector<8x1xf32>
    %cst_20 = arith.constant 9.99999974E-6 : f32
    %39 = vector.broadcast %cst_20 : f32 to vector<8x1xf32>
    %40 = arith.addf %38, %39 : vector<8x1xf32>
    %41 = math.rsqrt %40 : vector<8x1xf32>
    %42 = vector.broadcast %41 : vector<8x1xf32> to vector<8x32xf32>
    %43 = arith.mulf %33, %42 : vector<8x32xf32>
    %c0_21 = arith.constant 0 : index
    %c0_22 = arith.constant 0 : index
    %44 = vector.load %arg6[%c0_21, %c0_22] : memref<1x32xf32, #tpu.memory_space<vmem>>, vector<1x32xf32>
    %45 = vector.broadcast %44 : vector<1x32xf32> to vector<8x32xf32>
    %46 = arith.mulf %43, %45 : vector<8x32xf32>
    %c0_23 = arith.constant 0 : index
    %c0_24 = arith.constant 0 : index
    %47 = vector.load %arg7[%c0_23, %c0_24] : memref<1x32xf32, #tpu.memory_space<vmem>>, vector<1x32xf32>
    %48 = vector.broadcast %47 : vector<1x32xf32> to vector<8x32xf32>
    %49 = arith.addf %46, %48 : vector<8x32xf32>
    %c0_25 = arith.constant 0 : index
    %c0_26 = arith.constant 0 : index
    %50 = vector.load %arg8[%c0_25, %c0_26] : memref<8x32xf32, #tpu.memory_space<vmem>>, vector<8x32xf32>
    tpu.vector_store %arg8[%c0_25, %c0_26], %49 {strides = array<i32>} : memref<8x32xf32, #tpu.memory_space<vmem>>, vector<8x32xf32>,
    return
  }
  func.func @transform_0(%arg0: i32) -> (i32, i32) {
    %c0_i32 = arith.constant 0 : i32
    %c0_i32_0 = arith.constant 0 : i32
    return %arg0, %c0_i32 : i32, i32
  }
  func.func @transform_1(%arg0: i32) -> (i32, i32) {
    %c0_i32 = arith.constant 0 : i32
    %c0_i32_0 = arith.constant 0 : i32
    %c0_i32_1 = arith.constant 0 : i32
    return %c0_i32, %c0_i32_0 : i32, i32
  }
  func.func @transform_2(%arg0: i32) -> (i32, i32) {
    %c0_i32 = arith.constant 0 : i32
    %c0_i32_0 = arith.constant 0 : i32
    %c0_i32_1 = arith.constant 0 : i32
    return %c0_i32, %c0_i32_0 : i32, i32
  }
  func.func @transform_3(%arg0: i32) -> (i32, i32) {
    %c0_i32 = arith.constant 0 : i32
    %c0_i32_0 = arith.constant 0 : i32
    %c0_i32_1 = arith.constant 0 : i32
    return %c0_i32, %c0_i32_0 : i32, i32
  }
  func.func @transform_4(%arg0: i32) -> (i32, i32) {
    %c0_i32 = arith.constant 0 : i32
    %c0_i32_0 = arith.constant 0 : i32
    %c0_i32_1 = arith.constant 0 : i32
    return %c0_i32, %c0_i32_0 : i32, i32
  }
  func.func @transform_5(%arg0: i32) -> (i32, i32) {
    %c0_i32 = arith.constant 0 : i32
    %c0_i32_0 = arith.constant 0 : i32
    %c0_i32_1 = arith.constant 0 : i32
    return %c0_i32, %c0_i32_0 : i32, i32
  }
  func.func @transform_6(%arg0: i32) -> (i32, i32) {
    %c0_i32 = arith.constant 0 : i32
    %c0_i32_0 = arith.constant 0 : i32
    %c0_i32_1 = arith.constant 0 : i32
    return %c0_i32, %c0_i32_0 : i32, i32
  }
  func.func @transform_7(%arg0: i32) -> (i32, i32) {
    %c0_i32 = arith.constant 0 : i32
    %c0_i32_0 = arith.constant 0 : i32
    return %arg0, %c0_i32 : i32, i32
  }
}

</mosaic_0001>

<llo_original>
// kernel: tpu_custom_call.1
$region0: #{tpu_custom_call.1}
  #allocation0 [shape = 'u32[]', space=smem, size = 0x4, offset = 0x4, fixed_abs, tag = 'smem constant byte address 0x4 - core index']
  #allocation1 [shape = 'u32[72,128]{1,0:T(1,128)}', space=vmem, size = 0x9000, scoped, tag = 'internal scratch']
  %s0 = inlined_call_operand.vmem [shape: f32[16,32], index: 0, kind: input, shape index: {}]
  %s1 = inlined_call_operand.vmem [shape: bf16[32,64], index: 1, kind: input, shape index: {}]
  %s2 = inlined_call_operand.vmem [shape: f32[1,64], index: 2, kind: input, shape index: {}]
  %s3 = inlined_call_operand.vmem [shape: bf16[64,32], index: 3, kind: input, shape index: {}]
  %s4 = inlined_call_operand.vmem [shape: f32[1,32], index: 4, kind: input, shape index: {}]
  %s5 = inlined_call_operand.vmem [shape: f32[1,32], index: 5, kind: input, shape index: {}]
  %s6 = inlined_call_operand.vmem [shape: f32[1,32], index: 6, kind: input, shape index: {}]
  %s7 = inlined_call_operand.hbm [shape: f32[16,32], index: 7, kind: output, shape index: {}]
  %s8 = sld [smem:[#allocation0]]
  $region61: #{tpu_custom_call.1} parent=0
    _
  %s10 = ssub.s32 1, %s8
  %s11 = scalar_select 0, %s10, %s8
  $region1: #{tpu_custom_call.1} parent=0
    #allocation2 [shape = 'u8[8192]{0}', space=vmem, size = 0x2000, scoped, tag = 'output window, operand 0']
    #allocation3 [shape = 's32[2]{0}', space=sflag, size = 0x8, scoped, tag = 'scoped memory for tpu_custom_call.1']
    %12 = vsyncpa [#allocation3], 0
    %s13 = scalar_lea.sflag [#allocation3], 1
    %14 = vsyncpa %s13, 0
    loop: start=0, step=1, limit=4
    $region2: #{tpu_custom_call.1} parent=1 // loop_pre_header
      _
    $region3: #{tpu_custom_call.1} parent=1 // loop_header
      %s16 = sphi 0, %s20
      %p17 = scmp.ge.s32.totalorder %s16, 4
      %s26 = sphi 0, %s28
      %s29 = sphi 0, %s26
      %s30 = sphi 0, %s29
      %s46 = sphi 0, %s30
      %s50 = sphi 0, %s50
      %s52 = sphi 0, %s50
      %s53 = sphi 0, %s52
      %s67 = sphi 0, %s53
      %s71 = sphi 0, %s71
      %s73 = sphi 0, %s71
      %s74 = sphi 0, %s73
      %s88 = sphi 0, %s74
      %s92 = sphi 0, %s92
      %s94 = sphi 0, %s92
      %s95 = sphi 0, %s94
      %s109 = sphi 0, %s95
      %s113 = sphi 0, %s113
      %s115 = sphi 0, %s113
      %s116 = sphi 0, %s115
      %s130 = sphi 0, %s116
      %s134 = sphi 0, %s134
      %s136 = sphi 0, %s134
      %s137 = sphi 0, %s136
      %s151 = sphi 0, %s137
      %s155 = sphi 0, %s155
      %s157 = sphi 0, %s155
      %s158 = sphi 0, %s157
      %s172 = sphi 0, %s158
      %s178 = sphi 0, %s180
      %s181 = sphi 0, %s178
      %s182 = sphi 0, %s181
      %s198 = sphi 0, %s182
    $region4: #{tpu_custom_call.1} parent=1 // loop_header_branch
      %19 = sbr.rel (%p17) target = $region8
    $region5: #{tpu_custom_call.1} parent=1 // loop_body
      %s21 = ssub.s32 %s16, 1
      %s22 = ssub.s32 %s16, 2
      %s23 = sadd.s32 %s16, 1
      %s24 = ssub.s32 %s16, %s23
      %p25 = scmp.eq.s32.totalorder %s24, 0
      %s27 = sadd.s32 %s26, 1
      %s28 = scalar_select %p25, %s26, %s27
      %p31 = pneg %p25
      %p32 = scmp.eq.s32.totalorder %s16, 1
      %p33 = por %p31, %p32
      %p34 = scmp.ne.s32.totalorder %s26, %s29
      %p35 = scmp.eq.s32.totalorder %s16, 0
      %p36 = por %p34, %p35
      %p37 = scmp.ne.s32.totalorder %s26, %s29
      %p38 = scmp.eq.s32.totalorder %s21, 1
      %p39 = por %p37, %p38
      %p40 = scmp.ne.s32.totalorder %s29, %s30
      %p41 = scmp.eq.s32.totalorder %s21, 0
      %p42 = por %p40, %p41
      %p43 = scmp.ne.s32.totalorder %s29, %s30
      %p44 = scmp.eq.s32.totalorder %s22, 1
      %p45 = por %p43, %p44
      %p47 = scmp.ne.s32.totalorder %s30, %s46
      %p48 = scmp.eq.s32.totalorder %s22, 0
      %p49 = por %p47, %p48
      %s51 = sadd.s32 %s50, 1
      %p54 = scmp.eq.s32.totalorder %s16, 1
      %p55 = scmp.ne.s32.totalorder %s50, %s52
      %p56 = scmp.eq.s32.totalorder %s16, 0
      %p57 = por %p55, %p56
      %p58 = scmp.ne.s32.totalorder %s50, %s52
      %p59 = scmp.eq.s32.totalorder %s21, 1
      %p60 = por %p58, %p59
      %p61 = scmp.ne.s32.totalorder %s52, %s53
      %p62 = scmp.eq.s32.totalorder %s21, 0
      %p63 = por %p61, %p62
      %p64 = scmp.ne.s32.totalorder %s52, %s53
      %p65 = scmp.eq.s32.totalorder %s22, 1
      %p66 = por %p64, %p65
      %p68 = scmp.ne.s32.totalorder %s53, %s67
      %p69 = scmp.eq.s32.totalorder %s22, 0
      %p70 = por %p68, %p69
      %s72 = sadd.s32 %s71, 1
      %p75 = scmp.eq.s32.totalorder %s16, 1
      %p76 = scmp.ne.s32.totalorder %s71, %s73
      %p77 = scmp.eq.s32.totalorder %s16, 0
      %p78 = por %p76, %p77
      %p79 = scmp.ne.s32.totalorder %s71, %s73
      %p80 = scmp.eq.s32.totalorder %s21, 1
      %p81 = por %p79, %p80
      %p82 = scmp.ne.s32.totalorder %s73, %s74
      %p83 = scmp.eq.s32.totalorder %s21, 0
      %p84 = por %p82, %p83
      %p85 = scmp.ne.s32.totalorder %s73, %s74
      %p86 = scmp.eq.s32.totalorder %s22, 1
      %p87 = por %p85, %p86
      %p89 = scmp.ne.s32.totalorder %s74, %s88
      %p90 = scmp.eq.s32.totalorder %s22, 0
      %p91 = por %p89, %p90
      %s93 = sadd.s32 %s92, 1
      %p96 = scmp.eq.s32.totalorder %s16, 1
      %p97 = scmp.ne.s32.totalorder %s92, %s94
      %p98 = scmp.eq.s32.totalorder %s16, 0
      %p99 = por %p97, %p98
      %p100 = scmp.ne.s32.totalorder %s92, %s94
      %p101 = scmp.eq.s32.totalorder %s21, 1
      %p102 = por %p100, %p101
      %p103 = scmp.ne.s32.totalorder %s94, %s95
      %p104 = scmp.eq.s32.totalorder %s21, 0
      %p105 = por %p103, %p104
      %p106 = scmp.ne.s32.totalorder %s94, %s95
      %p107 = scmp.eq.s32.totalorder %s22, 1
      %p108 = por %p106, %p107
      %p110 = scmp.ne.s32.totalorder %s95, %s109
      %p111 = scmp.eq.s32.totalorder %s22, 0
      %p112 = por %p110, %p111
      %s114 = sadd.s32 %s113, 1
      %p117 = scmp.eq.s32.totalorder %s16, 1
      %p118 = scmp.ne.s32.totalorder %s113, %s115
      %p119 = scmp.eq.s32.totalorder %s16, 0
      %p120 = por %p118, %p119
      %p121 = scmp.ne.s32.totalorder %s113, %s115
      %p122 = scmp.eq.s32.totalorder %s21, 1
      %p123 = por %p121, %p122
      %p124 = scmp.ne.s32.totalorder %s115, %s116
      %p125 = scmp.eq.s32.totalorder %s21, 0
      %p126 = por %p124, %p125
      %p127 = scmp.ne.s32.totalorder %s115, %s116
      %p128 = scmp.eq.s32.totalorder %s22, 1
      %p129 = por %p127, %p128
      %p131 = scmp.ne.s32.totalorder %s116, %s130
      %p132 = scmp.eq.s32.totalorder %s22, 0
      %p133 = por %p131, %p132
      %s135 = sadd.s32 %s134, 1
      %p138 = scmp.eq.s32.totalorder %s16, 1
      %p139 = scmp.ne.s32.totalorder %s134, %s136
      %p140 = scmp.eq.s32.totalorder %s16, 0
      %p141 = por %p139, %p140
      %p142 = scmp.ne.s32.totalorder %s134, %s136
      %p143 = scmp.eq.s32.totalorder %s21, 1
      %p144 = por %p142, %p143
      %p145 = scmp.ne.s32.totalorder %s136, %s137
      %p146 = scmp.eq.s32.totalorder %s21, 0
      %p147 = por %p145, %p146
      %p148 = scmp.ne.s32.totalorder %s136, %s137
      %p149 = scmp.eq.s32.totalorder %s22, 1
      %p150 = por %p148, %p149
      %p152 = scmp.ne.s32.totalorder %s137, %s151
      %p153 = scmp.eq.s32.totalorder %s22, 0
      %p154 = por %p152, %p153
      %s156 = sadd.s32 %s155, 1
      %p159 = scmp.eq.s32.totalorder %s16, 1
      %p160 = scmp.ne.s32.totalorder %s155, %s157
      %p161 = scmp.eq.s32.totalorder %s16, 0
      %p162 = por %p160, %p161
      %p163 = scmp.ne.s32.totalorder %s155, %s157
      %p164 = scmp.eq.s32.totalorder %s21, 1
      %p165 = por %p163, %p164
      %p166 = scmp.ne.s32.totalorder %s157, %s158
      %p167 = scmp.eq.s32.totalorder %s21, 0
      %p168 = por %p166, %p167
      %p169 = scmp.ne.s32.totalorder %s157, %s158
      %p170 = scmp.eq.s32.totalorder %s22, 1
      %p171 = por %p169, %p170
      %p173 = scmp.ne.s32.totalorder %s158, %s172
      %p174 = scmp.eq.s32.totalorder %s22, 0
      %p175 = por %p173, %p174
      %s176 = ssub.s32 %s16, %s23
      %p177 = scmp.eq.s32.totalorder %s176, 0
      %s179 = sadd.s32 %s178, 1
      %s180 = scalar_select %p177, %s178, %s179
      %p183 = pneg %p177
      %p184 = scmp.eq.s32.totalorder %s16, 1
      %p185 = por %p183, %p184
      %p186 = scmp.ne.s32.totalorder %s178, %s181
      %p187 = scmp.eq.s32.totalorder %s16, 0
      %p188 = por %p186, %p187
      %p189 = scmp.ne.s32.totalorder %s178, %s181
      %p190 = scmp.eq.s32.totalorder %s21, 1
      %p191 = por %p189, %p190
      %p192 = scmp.ne.s32.totalorder %s181, %s182
      %p193 = scmp.eq.s32.totalorder %s21, 0
      %p194 = por %p192, %p193
      %p195 = scmp.ne.s32.totalorder %s181, %s182
      %p196 = scmp.eq.s32.totalorder %s22, 1
      %p197 = por %p195, %p196
      %p199 = scmp.ne.s32.totalorder %s182, %s198
      %p200 = scmp.eq.s32.totalorder %s22, 0
      %p201 = por %p199, %p200
      %p202 = scmp.le.s32.totalorder 1, %s16
      %p203 = scmp.lt.s32.totalorder %s16, 3
      %p204 = pnand %p202, %p203
      %p205 = pneg %p204
      // Predicated region
      $region9: #{tpu_custom_call.1} parent=5 // pred_check
        _
      $region10: #{tpu_custom_call.1} parent=5 // pred_check_branch
        %207 = sbr.rel (%p204) target = $region12
      $region11: #{tpu_custom_call.1} parent=5 // pred_region
        %s208 = ssub.s32 %s16, 1
        // Predicated region
        $region13: #{tpu_custom_call.1} parent=11 // pred_check
          %p209 = pneg %p63
        $region14: #{tpu_custom_call.1} parent=11 // pred_check_branch
          %211 = sbr.rel (%p209) target = $region16
        $region15: #{tpu_custom_call.1} parent=11 // pred_region
          _
        $region16: #{tpu_custom_call.1} parent=11 // pred_fallthru
          _
        // Predicated region
        $region17: #{tpu_custom_call.1} parent=11 // pred_check
          %p212 = pneg %p84
        $region18: #{tpu_custom_call.1} parent=11 // pred_check_branch
          %214 = sbr.rel (%p212) target = $region20
        $region19: #{tpu_custom_call.1} parent=11 // pred_region
          _
        $region20: #{tpu_custom_call.1} parent=11 // pred_fallthru
          _
        // Predicated region
        $region21: #{tpu_custom_call.1} parent=11 // pred_check
          %p215 = pneg %p105
        $region22: #{tpu_custom_call.1} parent=11 // pred_check_branch
          %217 = sbr.rel (%p215) target = $region24
        $region23: #{tpu_custom_call.1} parent=11 // pred_region
          _
        $region24: #{tpu_custom_call.1} parent=11 // pred_fallthru
          _
        // Predicated region
        $region25: #{tpu_custom_call.1} parent=11 // pred_check
          %p218 = pneg %p126
        $region26: #{tpu_custom_call.1} parent=11 // pred_check_branch
          %220 = sbr.rel (%p218) target = $region28
        $region27: #{tpu_custom_call.1} parent=11 // pred_region
          _
        $region28: #{tpu_custom_call.1} parent=11 // pred_fallthru
          _
        // Predicated region
        $region29: #{tpu_custom_call.1} parent=11 // pred_check
          %p221 = pneg %p147
        $region30: #{tpu_custom_call.1} parent=11 // pred_check_branch
          %223 = sbr.rel (%p221) target = $region32
        $region31: #{tpu_custom_call.1} parent=11 // pred_region
          _
        $region32: #{tpu_custom_call.1} parent=11 // pred_fallthru
          _
        // Predicated region
        $region33: #{tpu_custom_call.1} parent=11 // pred_check
          %p224 = pneg %p168
        $region34: #{tpu_custom_call.1} parent=11 // pred_check_branch
          %226 = sbr.rel (%p224) target = $region36
        $region35: #{tpu_custom_call.1} parent=11 // pred_region
          _
        $region36: #{tpu_custom_call.1} parent=11 // pred_fallthru
          _
      $region12: #{tpu_custom_call.1} parent=5 // pred_fallthru
        _
      %p227 = scmp.lt.s32.totalorder %s16, 2
      // Predicated region
      $region37: #{tpu_custom_call.1} parent=5 // pred_check
        %p228 = pneg %p227
      $region38: #{tpu_custom_call.1} parent=5 // pred_check_branch
        %230 = sbr.rel (%p228) target = $region40
      $region39: #{tpu_custom_call.1} parent=5 // pred_region
        // Predicated region
        $region41: #{tpu_custom_call.1} parent=39 // pred_check
          %p231 = pneg %p36
        $region42: #{tpu_custom_call.1} parent=39 // pred_check_branch
          %233 = sbr.rel (%p231) target = $region44
        $region43: #{tpu_custom_call.1} parent=39 // pred_region
          %p234 = scmp.lt.s32.totalorder %s16, 1
          %s235 = scalar_select %p234, %s16, 1
          %s236 = smul.addr %s235, 8
          %s237 = scalar_lea.vmem %s0, %s236
        $region44: #{tpu_custom_call.1} parent=39 // pred_fallthru
          _
      $region40: #{tpu_custom_call.1} parent=5 // pred_fallthru
        _
      %p238 = scmp.le.s32.totalorder 1, %s16
      %p239 = scmp.lt.s32.totalorder %s16, 3
      %p240 = pnand %p238, %p239
      %p241 = pneg %p240
      // Predicated region
      $region45: #{tpu_custom_call.1} parent=5 // pred_check
        _
      $region46: #{tpu_custom_call.1} parent=5 // pred_check_branch
        %243 = sbr.rel (%p240) target = $region48
      $region47: #{tpu_custom_call.1} parent=5 // pred_region
        %s244 = ssub.s32 %s16, 1
        %p245 = scmp.lt.s32.totalorder %s21, 1
        %s246 = scalar_select %p245, %s21, 1
        %s247 = smul.addr %s246, 8
        %s248 = scalar_lea.vmem %s0, %s247
        %p249 = pneg %p42
        %p250 = pneg %p39
        %p251 = pneg %p63
        %p252 = pneg %p60
        %p253 = pneg %p84
        %p254 = pneg %p81
        %p255 = pneg %p105
        %p256 = pneg %p102
        %p257 = pneg %p126
        %p258 = pneg %p123
        %p259 = pneg %p147
        %p260 = pneg %p144
        %p261 = pneg %p168
        %p262 = pneg %p165
        %p263 = pneg %p194
        %p264 = pneg %p191
        %s265 = sand.u32 %s181, 1
        %s266 = scalar_lea.sflag [#allocation3], %s265
        %s267 = sand.u32 %s181, 1
        %s268 = smul.addr %s267, 8
        %s269 = scalar_lea.vmem [#allocation2], %s268
        %p270 = scmp.lt.s32.totalorder %s21, 1
        %s271 = scalar_select %p270, %s21, 1
        %s272 = smul.addr %s271, 8
        %s273 = scalar_lea.vmem %s0, %s272
        %v275 = vld [vmem:[%s273] sm:$0xff]
        %v276 = vpack.c.bf16 %v275, %v275
        %v277 = vld [vmem:[%s1] sm:$0xf]
        %v278 = vld [vmem:[%s1 + $0x4] sm:$0xf]
        %v279 = vld [vmem:[%s1 + $0x8] sm:$0xf]
        %v280 = vld [vmem:[%s1 + $0xc] sm:$0xf]
        %v281 = vld [vmem:[%s2] sm:$0x1]
        %v283 = vperm.slane %v281, 0
        %v289 = vunpack.c.l.b16 %v277
        %v290 = vunpack.c.l.b16 %v278
        %v291 = vunpack.c.l.b16 %v279
        %v292 = vunpack.c.l.b16 %v280
        %v293 = vpack.c.b16 %v290, %v289
        %v294 = vpack.c.b16 %v292, %v291
        %vm297 = vcmask 261120
        %v299 = vsel %vm297, %v276, 0
        %301 = vmatpush.bf16.msra.mxu0 0
        %302 = vmatpush.bf16.msra.mxu0 0
        %303 = vmatpush.bf16.msra.mxu0 0
        %304 = vmatpush.bf16.msra.mxu0 0
        %305 = vmatpush.bf16.msra.mxu0 0
        %306 = vmatpush.bf16.msra.mxu0 0
        %307 = vmatpush.bf16.msra.mxu0 %v294
        %308 = vmatpush.bf16.msra.mxu0 %v293
        %309 = vmatmul.bf16.gmra.mxu0 %v299
        %v310 = vpop.f32.mrf.mxu0
        %v311 = vadd.f32 %v283, %v310
        %v312 = vpop.f32.mrf.mxu0
        %313 = vdwg.mxu0
        %v314 = vmul.f32 %v311, %v311
        %v315 = vmul.f32 %v314, %v311
        %v316 = vmul.f32 %v315, 0.044715
        %v317 = vadd.f32 %v311, %v316
        %v318 = vmul.f32 %v317, 0.7978846
        %v319 = vmul.f32 %v311, 0.5
        %v320 = vtanh.pop %v318
        %v321 = vadd.f32 %v320, 1.0
        %v322 = vmul.f32 %v319, %v321
        %v323 = vpack.c.bf16 %v322, %v322
        %v324 = vld [vmem:[%s3] sm:$0xf]
        %v325 = vld [vmem:[%s3 + $0x4] sm:$0xf]
        %v326 = vld [vmem:[%s3 + $0x8] sm:$0xf]
        %v327 = vld [vmem:[%s3 + $0xc] sm:$0xf]
        %v328 = vld [vmem:[%s3 + $0x10] sm:$0xf]
        %v329 = vld [vmem:[%s3 + $0x14] sm:$0xf]
        %v330 = vld [vmem:[%s3 + $0x18] sm:$0xf]
        %v331 = vld [vmem:[%s3 + $0x1c] sm:$0xf]
        %v332 = vld [vmem:[%s4] sm:$0x1]
        %v334 = vperm.slane %v332, 0
        %v344 = vunpack.c.l.b16 %v324
        %v345 = vunpack.c.l.b16 %v325
        %v346 = vunpack.c.l.b16 %v326
        %v347 = vunpack.c.l.b16 %v327
        %v348 = vunpack.c.l.b16 %v328
        %v349 = vunpack.c.l.b16 %v329
        %v350 = vunpack.c.l.b16 %v330
        %v351 = vunpack.c.l.b16 %v331
        %v352 = vpack.c.b16 %v345, %v344
        %v353 = vpack.c.b16 %v347, %v346
        %v354 = vpack.c.b16 %v349, %v348
        %v355 = vpack.c.b16 %v351, %v350
        %vm360 = vcmask 523264
        %v362 = vsel %vm360, %v323, 0
        %364 = vmatpush.bf16.msra.mxu0 0
        %365 = vmatpush.bf16.msra.mxu0 0
        %366 = vmatpush.bf16.msra.mxu0 0
        %367 = vmatpush.bf16.msra.mxu0 0
        %368 = vmatpush.bf16.msra.mxu0 %v355
        %369 = vmatpush.bf16.msra.mxu0 %v354
        %370 = vmatpush.bf16.msra.mxu0 %v353
        %371 = vmatpush.bf16.msra.mxu0 %v352
        %372 = vmatmul.bf16.gmra.mxu0 %v362
        %v373 = vpop.f32.mrf.mxu0
        %v374 = vadd.f32 %v334, %v373
        %v375 = vpop.f32.mrf.mxu0
        %376 = vdwg.mxu0
        %v377 = vadd.f32 %v374, %v275
        %v378 = vsel %vm297, %v377, 0.0
        %379 = vadd.xlane.f32.xlu0 %v378
        %v380 = vpop.xlane.xlu0 %379
        %v381 = vrcp.pop 32.0
        %v382 = vmul.f32 32.0, %v381
        %v383 = vsub.f32 1.0, %v382
        %v384 = vmul.f32 %v381, %v383
        %v385 = vadd.f32 %v381, %v384
        %vm386 = vweird.f32 %v381
        %v387 = vsel %vm386, %v381, %v385
        %v388 = vmul.f32 %v380, %v387
        %v389 = vsub.f32 %v377, %v388
        %v390 = vmul.f32 %v389, %v389
        %v391 = vsel %vm297, %v390, 0.0
        %392 = vadd.xlane.f32.xlu0 %v391
        %v393 = vpop.xlane.xlu0 %392
        %v394 = vmul.f32 %v393, %v387
        %v395 = vadd.f32 %v394, 1e-05
        %v396 = vrsqrt.pop %v395
        %v397 = vmul.f32 %v396, %v395
        %v398 = vmul.f32 %v397, %v396
        %v399 = vmul.f32 0.5, %v398
        %v400 = vsub.f32 1.5, %v399
        %v401 = vmul.f32 %v396, %v400
        %vm402 = vweird.f32 %v395
        %vm403 = vweird.f32 %v396
        %vm404 = vmor %vm402, %vm403
        %v405 = vsel %vm404, %v396, %v401
        %v406 = vmul.f32 %v389, %v405
        %v407 = vld [vmem:[%s5] sm:$0x1]
        %v409 = vperm.slane %v407, 0
        %v411 = vmul.f32 %v406, %v409
        %v412 = vld [vmem:[%s6] sm:$0x1]
        %v414 = vperm.slane %v412, 0
        %v416 = vadd.f32 %v411, %v414
        %417 = vst.msk [vmem:[%s269] sm:$0xff] %vm297, %v416
        %s418 = sand.u32 %s181, 1
        %s419 = scalar_lea.sflag [#allocation3], %s418
        %s420 = sand.u32 %s181, 1
        %s421 = smul.addr %s420, 8
        %s422 = scalar_lea.vmem [#allocation2], %s421
        // Predicated region
        $region49: #{tpu_custom_call.1} parent=47 // pred_check
          %p423 = pneg %p191
        $region50: #{tpu_custom_call.1} parent=47 // pred_check_branch
          %425 = sbr.rel (%p423) target = $region52
        $region51: #{tpu_custom_call.1} parent=47 // pred_region
          %427 = vsyncadd %s419, 0
          %s428 = smul.addr %s21, 8
          %s429 = scalar_lea.hbm %s7, %s428
          %s431 = sshll.u32 %s422, 4
          %s432 = int_to_ptr.vmem [resolvable:$true] %s431
          %s433 = sshll.u32 %s429, 4
          %s434 = int_to_ptr.hbm [resolvable:$true] %s433
          %436 = dma.vmem_to_hbm [thread:$0]  %s432, 128, %s434, %s419
        $region52: #{tpu_custom_call.1} parent=47 // pred_fallthru
          _
      $region48: #{tpu_custom_call.1} parent=5 // pred_fallthru
        _
      %p437 = scmp.le.s32.totalorder 2, %s16
      // Predicated region
      $region53: #{tpu_custom_call.1} parent=5 // pred_check
        %p438 = pneg %p437
      $region54: #{tpu_custom_call.1} parent=5 // pred_check_branch
        %440 = sbr.rel (%p438) target = $region56
      $region55: #{tpu_custom_call.1} parent=5 // pred_region
        %s441 = ssub.s32 %s16, 2
        // Predicated region
        $region57: #{tpu_custom_call.1} parent=55 // pred_check
          %p442 = pneg %p197
        $region58: #{tpu_custom_call.1} parent=55 // pred_check_branch
          %444 = sbr.rel (%p442) target = $region60
        $region59: #{tpu_custom_call.1} parent=55 // pred_region
          %s445 = sand.u32 %s182, 1
          %s446 = scalar_lea.sflag [#allocation3], %s445
          %s447 = sand.u32 %s182, 1
          %s448 = smul.addr %s447, 8
          %s449 = scalar_lea.vmem [#allocation2], %s448
          %451 = dma.done %s446, 128
        $region60: #{tpu_custom_call.1} parent=55 // pred_fallthru
          _
      $region56: #{tpu_custom_call.1} parent=5 // pred_fallthru
        _
    $region6: #{tpu_custom_call.1} parent=1 // loop_footer
      %s20 = sadd.s32 1, %s16
    $region7: #{tpu_custom_call.1} parent=1 // loop_footer_branch
      %15 = sbr.rel target = $region3
    $region8: #{tpu_custom_call.1} parent=1 // loop_exit
      _
    %452 = vsyncpa [#allocation3], 1
    %s453 = scalar_lea.sflag [#allocation3], 1
    %454 = vsyncpa %s453, 1

</llo_original>
